<compile_context>
chip_gen: v6e
topology: v6e:2x2x1
jax: 0.10.0
libtpu: 0.0.40
codegen_flags: <defaults>
</compile_context>

<pallas_src>
import functools

import jax
import jax.numpy as jnp
from jax.experimental import pallas as pl
from jax.experimental.pallas import tpu as pltpu

_LORENTZ_EPS = 1e-7   # float32 eps used by the Lorentz manifold sqdist clamp
_ROWSUM_EPS = 1e-10   # epsilon added to e_rowsum in the reference module


def _geom_att_kernel(params_ref, rows_ref, xs_ref, xd_ref,
                     edge_e_ref, rowsum_ref):
    nj = pl.program_id(0)          # node-tile index
    ei = pl.program_id(1)          # edge-tile index (reduction axis)

    beta = params_ref[0]
    con = params_ref[1]
    c = params_ref[2]

    xs = xs_ref[...]               # (d, TE) f32 : x[edge[0]]^T tile
    xd = xd_ref[...]               # (d, TE) f32 : x[edge[1]]^T tile
    prod = xs * xd                 # (d, TE)

    # Lorentz inner product  <x,y>_L = -x0*y0 + sum_{i>=1} xi*yi
    #                               = sum_i xi*yi - 2*x0*y0
    l_inner = jnp.sum(prod, axis=0, keepdims=True) - 2.0 * prod[0:1, :]   # (1, TE)

    # squared Lorentzian distance with the manifold's clamp
    sqd = jnp.clip(-2.0 * (c + l_inner), _LORENTZ_EPS, 50.0)              # (1, TE)

    edge_e = jnp.tanh(beta * sqd + con)                                   # (1, TE)
    edge_e_ref[...] = edge_e       # lane-dense store

    # ---- e_rowsum accumulation (segmented sum of |edge_e| over row index) ----
    @pl.when(ei == 0)
    def _():
        rowsum_ref[...] = jnp.full(rowsum_ref.shape, _ROWSUM_EPS,
                                   dtype=rowsum_ref.dtype)

    tn = rowsum_ref.shape[0]
    te = rows_ref.shape[1]
    rows = rows_ref[...]                                                  # (1, TE) int32; pad = -1
    node_ids = jax.lax.broadcasted_iota(jnp.int32, (tn, te), 0) + nj * tn # (TN, TE)
    onehot = node_ids == rows                                             # (TN, TE) bool
    contrib = jnp.sum(jnp.where(onehot, jnp.abs(edge_e), 0.0),
                      axis=1, keepdims=True)                              # (TN, 1)
    rowsum_ref[...] += contrib


def _round_up(v, m):
    return ((v + m - 1) // m) * m


def geometric_aware_hyp_agg_att(x, edge, beta, con, c=1.0):
    """x: (n, d) f32 node features; edge: (2, E) int32 COO indices."""
    n, d = x.shape
    e = edge.shape[1]

    # Tile sizes (lane-aligned).  TE bounded so the (TN, TE) compare stays small.
    te = min(512, _round_up(e, 128))
    e_pad = _round_up(e, te)
    tn = min(128, _round_up(n, 8))
    n_pad = _round_up(n, tn)

    src = edge[0].astype(jnp.int32)
    dst = edge[1].astype(jnp.int32)
    pad_e = e_pad - e
    src_g = jnp.pad(src, (0, pad_e))                               # gather idx (pad -> node 0)
    dst_g = jnp.pad(dst, (0, pad_e))
    rows_p = jnp.pad(src, (0, pad_e),
                     constant_values=-1).reshape(1, e_pad)         # scatter rows (pad -> -1)

    # glue: gather endpoint features (transposed: d on sublanes, edges on lanes)
    xT = x.astype(jnp.float32).T                                   # (d, n)
    xs_t = xT[:, src_g]                                            # (d, E_pad)
    xd_t = xT[:, dst_g]                                            # (d, E_pad)

    params = jnp.array([beta, con, c], dtype=jnp.float32)

    grid = (n_pad // tn, e_pad // te)
    edge_e_p, rowsum_p = pl.pallas_call(
        _geom_att_kernel,
        out_shape=(
            jax.ShapeDtypeStruct((1, e_pad), jnp.float32),         # edge_e (lane-dense)
            jax.ShapeDtypeStruct((n_pad, 1), jnp.float32),         # e_rowsum
        ),
        grid=grid,
        in_specs=[
            pl.BlockSpec(memory_space=pltpu.MemorySpace.SMEM),     # params [beta, con, c]
            pl.BlockSpec((1, te), lambda nj, ei: (0, ei)),         # rows (1, E_pad)
            pl.BlockSpec((d, te), lambda nj, ei: (0, ei)),         # xs_t (d, E_pad)
            pl.BlockSpec((d, te), lambda nj, ei: (0, ei)),         # xd_t (d, E_pad)
        ],
        out_specs=(
            pl.BlockSpec((1, te), lambda nj, ei: (0, ei)),         # edge_e tile
            pl.BlockSpec((tn, 1), lambda nj, ei: (nj, 0)),         # rowsum accumulator
        ),
        compiler_params=pltpu.CompilerParams(
            dimension_semantics=("arbitrary", "arbitrary"),
            vmem_limit_bytes=32 * 1024 * 1024,
        ),
    )(params, rows_p, xs_t, xd_t)

    edge_e = edge_e_p[0, :e]          # (E,)
    e_rowsum = rowsum_p[:n, :]        # (n, 1)
    return edge_e, e_rowsum


def _reference(x, edge, beta, con, c=1.0):
    """Pure-JAX reference of the PyTorch forward (Lorentz manifold)."""
    xs = x[edge[0], :]
    xd = x[edge[1], :]
    l_inner = jnp.sum(xs[:, 1:] * xd[:, 1:], axis=-1) - xs[:, 0] * xd[:, 0]
    sqd = jnp.clip(-2.0 * (c + l_inner), _LORENTZ_EPS, 50.0)
    edge_e = jnp.tanh(beta * sqd + con)
    n = x.shape[0]
    rowsum = jax.ops.segment_sum(jnp.abs(edge_e), edge[0], num_segments=n)
    return edge_e, rowsum.reshape(n, 1) + _ROWSUM_EPS


if __name__ == "__main__":
    key = jax.random.PRNGKey(0)

    n = 8            # number of nodes
    d = 8            # in_features (Lorentz ambient dim)
    x = jax.random.normal(key, (n, d), dtype=jnp.float32)

    # deterministic edge set: self loops + ring edges -> E = 16
    src = jnp.concatenate([jnp.arange(n), jnp.arange(n)])
    dst = jnp.concatenate([jnp.arange(n), (jnp.arange(n) + 1) % n])
    edge = jnp.stack([src, dst]).astype(jnp.int32)          # (2, 16)

    # parameters as in __init__: beta = con = 1e-6
    beta = jnp.float32(1e-6)
    con = jnp.float32(1e-6)

    edge_e, e_rowsum = geometric_aware_hyp_agg_att(x, edge, beta, con, c=1.0)
    jax.block_until_ready((edge_e, e_rowsum))

    ref_e, ref_rowsum = _reference(x, edge, beta, con, c=1.0)
    assert edge_e.shape == (edge.shape[1],)
    assert e_rowsum.shape == (n, 1)
    assert jnp.allclose(edge_e, ref_e, atol=1e-6, rtol=1e-5)
    assert jnp.allclose(e_rowsum, ref_rowsum, atol=1e-6, rtol=1e-5)

    print("KERNEL_OK")
</pallas_src>

<mosaic_0001>
module attributes {stable_mosaic.version = 11 : i64} {
  func.func @_geom_att_kernel(%arg0: i32, %arg1: i32, %arg2: memref<3xf32, #tpu.memory_space<smem>>, %arg3: memref<1x128xi32, #tpu.memory_space<vmem>>, %arg4: memref<8x128xf32, #tpu.memory_space<vmem>>, %arg5: memref<8x128xf32, #tpu.memory_space<vmem>>, %arg6: memref<1x128xf32, #tpu.memory_space<vmem>>, %arg7: memref<8x1xf32, #tpu.memory_space<vmem>>) attributes {dimension_semantics = [#tpu.dimension_semantics<arbitrary>, #tpu.dimension_semantics<arbitrary>], iteration_bounds = array<i64: 1, 1>, scalar_prefetch = 0 : i64, scratch_operands = 0 : i64, tpu.core_type = #tpu.core_type<tc>, window_params = [{transform_indices = @transform_0, window_bounds = array<i64: 3>}, {transform_indices = @transform_1, window_bounds = array<i64: 1, 128>}, {transform_indices = @transform_2, window_bounds = array<i64: 8, 128>}, {transform_indices = @transform_3, window_bounds = array<i64: 8, 128>}, {transform_indices = @transform_4, window_bounds = array<i64: 1, 128>}, {transform_indices = @transform_5, window_bounds = array<i64: 8, 1>}]} {
    %c0 = arith.constant 0 : index
    %0 = memref.load %arg2[%c0] : memref<3xf32, #tpu.memory_space<smem>>
    %c1 = arith.constant 1 : index
    %1 = memref.load %arg2[%c1] : memref<3xf32, #tpu.memory_space<smem>>
    %c2 = arith.constant 2 : index
    %2 = memref.load %arg2[%c2] : memref<3xf32, #tpu.memory_space<smem>>
    %c0_0 = arith.constant 0 : index
    %c0_1 = arith.constant 0 : index
    %3 = vector.load %arg4[%c0_0, %c0_1] : memref<8x128xf32, #tpu.memory_space<vmem>>, vector<8x128xf32>
    %c0_2 = arith.constant 0 : index
    %c0_3 = arith.constant 0 : index
    %4 = vector.load %arg5[%c0_2, %c0_3] : memref<8x128xf32, #tpu.memory_space<vmem>>, vector<8x128xf32>
    %5 = arith.mulf %3, %4 : vector<8x128xf32>
    %cst = arith.constant dense<0.000000e+00> : vector<128xf32>
    %6 = vector.multi_reduction <add>, %5, %cst [0] : vector<8x128xf32> to vector<128xf32>
    %7 = vector.shape_cast %6 : vector<128xf32> to vector<1x128xf32>
    %8 = vector.extract_strided_slice %5 {offsets = [0, 0], sizes = [1, 128], strides = [1, 1]} : vector<8x128xf32> to vector<1x128xf32>
    %cst_4 = arith.constant 2.000000e+00 : f32
    %9 = vector.broadcast %cst_4 : f32 to vector<1x128xf32>
    %10 = arith.mulf %9, %8 : vector<1x128xf32>
    %11 = arith.subf %7, %10 : vector<1x128xf32>
    %12 = vector.broadcast %2 : f32 to vector<1x128xf32>
    %13 = arith.addf %12, %11 : vector<1x128xf32>
    %cst_5 = arith.constant -2.000000e+00 : f32
    %14 = vector.broadcast %cst_5 : f32 to vector<1x128xf32>
    %15 = arith.mulf %14, %13 : vector<1x128xf32>
    %cst_6 = arith.constant 1.000000e-07 : f32
    %cst_7 = arith.constant 5.000000e+01 : f32
    %16 = vector.broadcast %cst_6 : f32 to vector<1x128xf32>
    %17 = arith.maximumf %16, %15 : vector<1x128xf32>
    %18 = vector.broadcast %cst_7 : f32 to vector<1x128xf32>
    %19 = arith.minimumf %18, %17 : vector<1x128xf32>
    %20 = vector.broadcast %0 : f32 to vector<1x128xf32>
    %21 = arith.mulf %20, %19 : vector<1x128xf32>
    %22 = vector.broadcast %1 : f32 to vector<1x128xf32>
    %23 = arith.addf %21, %22 : vector<1x128xf32>
    %24 = math.tanh %23 : vector<1x128xf32>
    %c0_8 = arith.constant 0 : index
    %c0_9 = arith.constant 0 : index
    %25 = vector.load %arg6[%c0_8, %c0_9] : memref<1x128xf32, #tpu.memory_space<vmem>>, vector<1x128xf32>
    tpu.vector_store %arg6[%c0_8, %c0_9], %24 {strides = array<i32>} : memref<1x128xf32, #tpu.memory_space<vmem>>, vector<1x128xf32>,
    %c0_i32 = arith.constant 0 : i32
    %26 = arith.cmpi eq, %arg1, %c0_i32 : i32
    %27 = arith.extui %26 : i1 to i32
    %c0_i32_10 = arith.constant 0 : i32
    %28 = arith.cmpi ne, %27, %c0_i32_10 : i32
    scf.if %28 {
      %cst_19 = arith.constant 1.000000e-10 : f32
      %46 = vector.broadcast %cst_19 : f32 to vector<8x1xf32>
      %c0_20 = arith.constant 0 : index
      %c0_21 = arith.constant 0 : index
      %47 = vector.load %arg7[%c0_20, %c0_21] : memref<8x1xf32, #tpu.memory_space<vmem>>, vector<8x1xf32>
      tpu.vector_store %arg7[%c0_20, %c0_21], %46 {strides = array<i32>} : memref<8x1xf32, #tpu.memory_space<vmem>>, vector<8x1xf32>,
    } else {
    }
    %c0_11 = arith.constant 0 : index
    %c0_12 = arith.constant 0 : index
    %29 = vector.load %arg3[%c0_11, %c0_12] : memref<1x128xi32, #tpu.memory_space<vmem>>, vector<1x128xi32>
    %30 = tpu.iota {dimensions = array<i32: 0>} : vector<8x128xi32>
    %c8_i32 = arith.constant 8 : i32
    %31 = arith.muli %arg0, %c8_i32 : i32
    %32 = vector.broadcast %31 : i32 to vector<8x128xi32>
    %33 = arith.addi %30, %32 : vector<8x128xi32>
    %34 = vector.broadcast %29 : vector<1x128xi32> to vector<8x128xi32>
    %35 = arith.cmpi eq, %33, %34 : vector<8x128xi32>
    %36 = math.absf %24 : vector<1x128xf32>
    %cst_13 = arith.constant 0.000000e+00 : f32
    %37 = vector.shape_cast %36 : vector<1x128xf32> to vector<1x128xf32>
    %38 = vector.broadcast %37 : vector<1x128xf32> to vector<8x128xf32>
    %39 = vector.broadcast %cst_13 : f32 to vector<8x128xf32>
    %40 = arith.select %35, %38, %39 : vector<8x128xi1>, vector<8x128xf32>
    %cst_14 = arith.constant dense<0.000000e+00> : vector<8xf32>
    %41 = vector.multi_reduction <add>, %40, %cst_14 [1] : vector<8x128xf32> to vector<8xf32>
    %42 = vector.shape_cast %41 : vector<8xf32> to vector<8x1xf32>
    %c0_15 = arith.constant 0 : index
    %c0_16 = arith.constant 0 : index
    %43 = vector.load %arg7[%c0_15, %c0_16] : memref<8x1xf32, #tpu.memory_space<vmem>>, vector<8x1xf32>
    %44 = arith.addf %43, %42 : vector<8x1xf32>
    %c0_17 = arith.constant 0 : index
    %c0_18 = arith.constant 0 : index
    %45 = vector.load %arg7[%c0_17, %c0_18] : memref<8x1xf32, #tpu.memory_space<vmem>>, vector<8x1xf32>
    tpu.vector_store %arg7[%c0_17, %c0_18], %44 {strides = array<i32>} : memref<8x1xf32, #tpu.memory_space<vmem>>, vector<8x1xf32>,
    return
  }
  func.func @transform_0(%arg0: i32, %arg1: i32) -> i32 {
    %c0_i32 = arith.constant 0 : i32
    %c0_i32_0 = arith.constant 0 : i32
    return %c0_i32 : i32
  }
  func.func @transform_1(%arg0: i32, %arg1: i32) -> (i32, i32) {
    %c0_i32 = arith.constant 0 : i32
    %c0_i32_0 = arith.constant 0 : i32
    return %c0_i32, %arg1 : i32, i32
  }
  func.func @transform_2(%arg0: i32, %arg1: i32) -> (i32, i32) {
    %c0_i32 = arith.constant 0 : i32
    %c0_i32_0 = arith.constant 0 : i32
    return %c0_i32, %arg1 : i32, i32
  }
  func.func @transform_3(%arg0: i32, %arg1: i32) -> (i32, i32) {
    %c0_i32 = arith.constant 0 : i32
    %c0_i32_0 = arith.constant 0 : i32
    return %c0_i32, %arg1 : i32, i32
  }
  func.func @transform_4(%arg0: i32, %arg1: i32) -> (i32, i32) {
    %c0_i32 = arith.constant 0 : i32
    %c0_i32_0 = arith.constant 0 : i32
    return %c0_i32, %arg1 : i32, i32
  }
  func.func @transform_5(%arg0: i32, %arg1: i32) -> (i32, i32) {
    %c0_i32 = arith.constant 0 : i32
    %c0_i32_0 = arith.constant 0 : i32
    return %arg0, %c0_i32 : i32, i32
  }
}

</mosaic_0001>

<llo_original>
// kernel: tpu_custom_call.1
$region0: #{tpu_custom_call.1}
  #allocation0 [shape = 'u32[]', space=smem, size = 0x4, offset = 0x4, fixed_abs, tag = 'smem constant byte address 0x4 - core index']
  #allocation1 [shape = 'u32[144,128]{1,0:T(1,128)}', space=vmem, size = 0x12000, scoped, tag = 'internal scratch']
  %s0 = inlined_call_operand.hbm [shape: f32[3], index: 0, kind: input, shape index: {}]
  %s1 = inlined_call_operand.vmem [shape: s32[1,128], index: 1, kind: input, shape index: {}]
  %s2 = inlined_call_operand.hbm [shape: f32[8,128], index: 2, kind: input, shape index: {}]
  %s3 = inlined_call_operand.hbm [shape: f32[8,128], index: 3, kind: input, shape index: {}]
  %s4 = inlined_call_operand.hbm [shape: f32[1,128], index: 4, kind: output, shape index: {0}]
  %s5 = inlined_call_operand.vmem [shape: f32[8,1], index: 5, kind: output, shape index: {1}]
  %6 = xla_tuple %s4, %s5
  %s7 = sld [smem:[#allocation0]]
  $region50: #{tpu_custom_call.1} parent=0
    _
  %s9 = ssub.s32 1, %s7
  %s10 = scalar_select 0, %s9, %s7
  $region1: #{tpu_custom_call.1} parent=0
    #allocation2 [shape = 'u8[512]{0}', space=smem, size = 0x200, scoped, tag = 'input window, operand 0, single buffered']
    #allocation3 [shape = 's32[1]{0}', space=sflag, size = 0x4, scoped, tag = 'scoped memory for tpu_custom_call.1']
    #allocation4 [shape = 's32[1]{0}', space=sflag, size = 0x4, scoped, tag = 'scoped memory for tpu_custom_call.1']
    #allocation5 [shape = 's32[1]{0}', space=sflag, size = 0x4, scoped, tag = 'scoped memory for tpu_custom_call.1']
    #allocation6 [shape = 'u8[4096]{0}', space=vmem, size = 0x1000, scoped, tag = 'input window, operand 2, single buffered']
    #allocation7 [shape = 'u8[4096]{0}', space=vmem, size = 0x1000, scoped, tag = 'input window, operand 3, single buffered']
    #allocation8 [shape = 's32[1]{0}', space=sflag, size = 0x4, scoped, tag = 'scoped memory for tpu_custom_call.1']
    #allocation9 [shape = 'u8[512]{0}', space=vmem, size = 0x400, scoped, tag = 'output window, operand 0, single buffered']
    %11 = vsyncpa [#allocation5], 0
    %12 = vsyncpa [#allocation3], 0
    %13 = vsyncpa [#allocation8], 0
    %14 = vsyncpa [#allocation4], 0
    // Predicated region
    $region2: #{tpu_custom_call.1} parent=1 // pred_check
      _
    $region3: #{tpu_custom_call.1} parent=1 // pred_check_branch
      %16 = sbr.rel (0) target = $region5
    $region4: #{tpu_custom_call.1} parent=1 // pred_region
      %s18 = ssub.s32 16, 16
      %19 = vsyncadd [#allocation5], %s18
      %22 = dma.hbm_to_smem %s0, 16, [#allocation2], [#allocation5]
    $region5: #{tpu_custom_call.1} parent=1 // pred_fallthru
      _
    // Predicated region
    $region6: #{tpu_custom_call.1} parent=1 // pred_check
      _
    $region7: #{tpu_custom_call.1} parent=1 // pred_check_branch
      %24 = sbr.rel (0) target = $region9
    $region8: #{tpu_custom_call.1} parent=1 // pred_region
      _
    $region9: #{tpu_custom_call.1} parent=1 // pred_fallthru
      _
    // Predicated region
    $region10: #{tpu_custom_call.1} parent=1 // pred_check
      _
    $region11: #{tpu_custom_call.1} parent=1 // pred_check_branch
      %26 = sbr.rel (0) target = $region13
    $region12: #{tpu_custom_call.1} parent=1 // pred_region
      %s28 = ssub.s32 128, 128
      %29 = vsyncadd [#allocation3], %s28
      %s31 = sshll.u32 [#allocation6], 4
      %s32 = int_to_ptr.vmem [resolvable:$true] %s31
      %34 = dma.hbm_to_vmem [thread:$0]  %s2, 128, %s32, [#allocation3]
    $region13: #{tpu_custom_call.1} parent=1 // pred_fallthru
      _
    // Predicated region
    $region14: #{tpu_custom_call.1} parent=1 // pred_check
      _
    $region15: #{tpu_custom_call.1} parent=1 // pred_check_branch
      %36 = sbr.rel (0) target = $region17
    $region16: #{tpu_custom_call.1} parent=1 // pred_region
      %s38 = ssub.s32 128, 128
      %39 = vsyncadd [#allocation8], %s38
      %s41 = sshll.u32 [#allocation7], 4
      %s42 = int_to_ptr.vmem [resolvable:$true] %s41
      %44 = dma.hbm_to_vmem [thread:$0]  %s3, 128, %s42, [#allocation8]
    $region17: #{tpu_custom_call.1} parent=1 // pred_fallthru
      _
    // Predicated region
    $region18: #{tpu_custom_call.1} parent=1 // pred_check
      _
    $region19: #{tpu_custom_call.1} parent=1 // pred_check_branch
      %46 = sbr.rel (0) target = $region21
    $region20: #{tpu_custom_call.1} parent=1 // pred_region
      %47 = dma.done [#allocation5], 16
    $region21: #{tpu_custom_call.1} parent=1 // pred_fallthru
      _
    // Predicated region
    $region22: #{tpu_custom_call.1} parent=1 // pred_check
      _
    $region23: #{tpu_custom_call.1} parent=1 // pred_check_branch
      %49 = sbr.rel (0) target = $region25
    $region24: #{tpu_custom_call.1} parent=1 // pred_region
      %50 = dma.done [#allocation3], 128
    $region25: #{tpu_custom_call.1} parent=1 // pred_fallthru
      _
    // Predicated region
    $region26: #{tpu_custom_call.1} parent=1 // pred_check
      _
    $region27: #{tpu_custom_call.1} parent=1 // pred_check_branch
      %52 = sbr.rel (0) target = $region29
    $region28: #{tpu_custom_call.1} parent=1 // pred_region
      %53 = dma.done [#allocation8], 128
    $region29: #{tpu_custom_call.1} parent=1 // pred_fallthru
      _
    %54 = sfence
    %s55 = sld [smem:[#allocation2]]
    %s56 = sld [smem:[#allocation2 + $0x1]]
    %s57 = sld [smem:[#allocation2 + $0x2]]
    %v58 = vld [vmem:[#allocation6] sm:$0xff]
    %v59 = vld [vmem:[#allocation7] sm:$0xff]
    %v60 = vmul.f32 %v58, %v59
    %v61 = vrot.slane %v60, 4
    %v62 = vadd.f32 %v60, %v61
    %v63 = vrot.slane %v62, 2
    %v64 = vadd.f32 %v62, %v63
    %v65 = vrot.slane %v64, 1
    %v66 = vadd.f32 %v64, %v65
    %v67 = vmul.f32 %v60, 2.0
    %v68 = vsub.f32 %v66, %v67
    %v69 = vstv %s57
    %v70 = vadd.f32 %v69, %v68
    %v71 = vmul.f32 %v70, -2.0
    %v72 = vmax.f32 %v71, 1e-07
    %v73 = vmin.f32 %v72, 50.0
    %v74 = vstv %s55
    %v75 = vmul.f32 %v74, %v73
    %v76 = vstv %s56
    %v77 = vadd.f32 %v75, %v76
    %v78 = vtanh.pop %v77
    %79 = vst [vmem:[#allocation9] sm:$0x1] %v78
    %p80 = scmp.eq.s32.totalorder 0, 0
    // Predicated region
    $region30: #{tpu_custom_call.1} parent=1 // pred_check
      %p81 = pneg %p80
    $region31: #{tpu_custom_call.1} parent=1 // pred_check_branch
      %83 = sbr.rel (%p81) target = $region33
    $region32: #{tpu_custom_call.1} parent=1 // pred_region
      %vm84 = vcmask 7168
      %85 = vst.msk [vmem:[%s5] sm:$0xff] %vm84, 1e-10
    $region33: #{tpu_custom_call.1} parent=1 // pred_fallthru
      _
    %v86 = vld [vmem:[%s1] sm:$0x1]
    %v87 = vlaneseq
    %v88 = vshrl.u32 %v87, 7
    %s89 = smul.u32 0, 8
    %v90 = vstv %s89
    %v91 = vadd.s32 %v88, %v90
    %v92 = vlaneseq
    %v93 = vshrl.u32 %v92, 7
    %v94 = vsub.s32 0, %v93
    %v95 = vrot.slane %v86, %v94
    %vm96 = vcmp.eq.s32.totalorder %v91, %v95
    %v97 = vand.u32 2147483647, %v78
    %v98 = vlaneseq
    %v99 = vshrl.u32 %v98, 7
    %v100 = vsub.s32 0, %v99
    %v101 = vrot.slane %v97, %v100
    %v102 = vsel %vm96, %v101, 0.0
    %103 = vadd.xlane.f32.xlu0 %v102
    %v104 = vpop.xlane.xlu0 %103
    %v105 = vld [vmem:[%s5] sm:$0xff]
    %v106 = vadd.f32 %v105, %v104
    %vm107 = vcmask 7168
    %108 = vst.msk [vmem:[%s5] sm:$0xff] %vm107, %v106
    // Predicated region
    $region34: #{tpu_custom_call.1} parent=1 // pred_check
      _
    $region35: #{tpu_custom_call.1} parent=1 // pred_check_branch
      %110 = sbr.rel (0) target = $region37
    $region36: #{tpu_custom_call.1} parent=1 // pred_region
      %s112 = ssub.s32 16, 16
      %113 = vsyncadd [#allocation4], %s112
      %s115 = sshll.u32 [#allocation9], 4
      %s116 = int_to_ptr.vmem [resolvable:$true] %s115
      %118 = dma.vmem_to_hbm [thread:$0]  %s116, 16, %s4, [#allocation4]
    $region37: #{tpu_custom_call.1} parent=1 // pred_fallthru
      _
    // Predicated region
    $region38: #{tpu_custom_call.1} parent=1 // pred_check
      _
    $region39: #{tpu_custom_call.1} parent=1 // pred_check_branch
      %120 = sbr.rel (0) target = $region41
    $region40: #{tpu_custom_call.1} parent=1 // pred_region
      _
    $region41: #{tpu_custom_call.1} parent=1 // pred_fallthru
      _
    // Predicated region
    $region42: #{tpu_custom_call.1} parent=1 // pred_check
      _
    $region43: #{tpu_custom_call.1} parent=1 // pred_check_branch
      %122 = sbr.rel (0) target = $region45
    $region44: #{tpu_custom_call.1} parent=1 // pred_region
      %123 = dma.done [#allocation4], 16
    $region45: #{tpu_custom_call.1} parent=1 // pred_fallthru
      _
    // Predicated region
    $region46: #{tpu_custom_call.1} parent=1 // pred_check
      _
    $region47: #{tpu_custom_call.1} parent=1 // pred_check_branch
      %125 = sbr.rel (0) target = $region49
    $region48: #{tpu_custom_call.1} parent=1 // pred_region
      _
    $region49: #{tpu_custom_call.1} parent=1 // pred_fallthru
      _
    %126 = vsyncpa [#allocation3], 1
    %127 = vsyncpa [#allocation8], 1
    %128 = vsyncpa [#allocation4], 1
    %129 = vsyncpa [#allocation5], 1

</llo_original>
